<compile_context>
chip_gen: v7x
topology: tpu7x:2x2x1
jax: 0.10.0
libtpu: 0.0.40
codegen_flags: <defaults>
</compile_context>

<pallas_src>
import functools

import jax
import jax.numpy as jnp
from jax.experimental import pallas as pl
from jax.experimental.pallas import tpu as pltpu

BN_EPS = 1e-5


# ---------------------------------------------------------------------------
# Pass 0: per-batch partial per-channel sum / sum-of-squares of y = W @ x.
# ---------------------------------------------------------------------------
def _stats_kernel(x_ref, w_ref, sum_ref, sumsq_ref):
    @pl.when(pl.program_id(1) == 0)
    def _():
        sum_ref[...] = jnp.zeros_like(sum_ref)
        sumsq_ref[...] = jnp.zeros_like(sumsq_ref)

    x = x_ref[0]                                                     # (C_in, TL)
    y = jnp.dot(w_ref[...], x, preferred_element_type=jnp.float32)  # (C_out, TL)
    sum_ref[0] += jnp.sum(y, axis=1, keepdims=True)
    sumsq_ref[0] += jnp.sum(y * y, axis=1, keepdims=True)


# ---------------------------------------------------------------------------
# Pass 1: y = W_scaled @ x + shift ; ReLU ; (+ residual from the x tile already
# resident in VMEM).  The BN scale is pre-folded into W, so no per-tile scale op.
# ---------------------------------------------------------------------------
def _norm_kernel(x_ref, w_ref, shift_ref, o_ref, *, shortcut):
    x = x_ref[0]                                                     # (C_in, TL)
    y = jnp.dot(w_ref[...], x, preferred_element_type=jnp.float32)  # (C_out, TL)
    y = jnp.maximum(y + shift_ref[...], 0.0)
    if shortcut:
        y = y + x
    o_ref[0] = y.astype(o_ref.dtype)


def _vmem_budget():
    """Returns (overall VMEM budget bytes, vmem_limit_bytes-or-None), generation aware."""
    try:
        cap = pltpu.get_tpu_info().vmem_capacity_bytes
    except Exception:
        # Unknown chip: stay under the default scoped limit, don't raise it.
        return 24 << 20, None
    if cap <= (64 << 20):          # v7x-class: 64 MiB physical per TensorCore
        limit = 48 << 20
    else:                          # v5e / v6e: 128 MiB physical
        limit = 100 << 20
    return limit, limit


def _select_tile(L, c_in, c_out, tile_budget_bytes):
    """Pick (TL, L_pad): TL a multiple of 128, sized from the VMEM tile budget."""
    # Per-lane VMEM of the pipelined tiles: x (C_in rows) + out (C_out rows),
    # each double-buffered, f32.  W / shift are constant-index (single-buffered).
    bytes_per_lane = 4 * 2 * (c_in + c_out)
    max_tl = max(128, (tile_budget_bytes // bytes_per_lane) // 128 * 128)
    L128 = -(-L // 128) * 128
    if L128 <= max_tl:
        return L128, L128
    # Prefer the largest 128-multiple divisor of the padded length (no extra padding).
    tl = max_tl
    while tl > 128 and L128 % tl != 0:
        tl -= 128
    if tl < max_tl // 2:
        tl = max_tl                 # divisor too small -> pad the length instead
    l_pad = -(-L128 // tl) * tl
    return tl, l_pad


def residual_block(x, conv_w, conv_b, bn_gamma, bn_beta, optional_shortcut=True):
    """Forward of ResidualBlock (kernel_size=1, stride=1, act=ReLU, training-mode BN).

    x:       (N, C_in, L) float32, NCL as in PyTorch.
    conv_w:  (C_out, C_in, 1) Conv1d weight.    conv_b: (C_out,) Conv1d bias.
    bn_gamma / bn_beta: (C_out,) BatchNorm1d affine parameters.
    """
    N, C_in, L = x.shape
    C_out = conv_w.shape[0]
    if optional_shortcut:
        assert C_in == C_out, "shortcut requires in_channels == out_channels"

    w = conv_w[:, :, 0].astype(jnp.float32)          # (C_out, C_in), no transpose needed

    vmem_budget, vmem_limit = _vmem_budget()
    w_bytes = 4 * C_out * C_in
    vec_bytes = 4 * C_out * 8                        # shift / partial-stat blocks (tiny)
    tile_budget = max(1 << 20, vmem_budget - w_bytes - vec_bytes - (2 << 20))
    TL, L_pad = _select_tile(L, C_in, C_out, tile_budget)
    # TODO(synk): for very large C (W alone approaching v7x's 64 MiB VMEM) add a k-grid
    # over C_in with a pl.when-initialized accumulator; unnecessary at these shapes.

    x_p = x if L_pad == L else jnp.pad(x, ((0, 0), (0, 0), (0, L_pad - L)))
    grid = (N, L_pad // TL)

    x_spec = pl.BlockSpec((1, C_in, TL), lambda n, l: (n, 0, l))
    w_spec = pl.BlockSpec((C_out, C_in), lambda n, l: (0, 0))

    # ---- pass 0: per-batch partial sum / sum-of-squares of y = W @ x ----
    stat_spec = pl.BlockSpec((1, C_out, 1), lambda n, l: (n, 0, 0))
    psum, psumsq = pl.pallas_call(
        _stats_kernel,
        out_shape=(jax.ShapeDtypeStruct((N, C_out, 1), jnp.float32),
                   jax.ShapeDtypeStruct((N, C_out, 1), jnp.float32)),
        grid=grid,
        in_specs=[x_spec, w_spec],
        out_specs=(stat_spec, stat_spec),
        compiler_params=pltpu.CompilerParams(
            dimension_semantics=("parallel", "arbitrary"),
            vmem_limit_bytes=vmem_limit),
    )(x_p, w)

    # ---- tiny XLA epilogue: reduce partials, fold BN into scale/shift, scale into W ----
    R = N * L                                        # padded columns contribute zeros
    sum_y = jnp.sum(psum[:, :, 0], axis=0)           # (C_out,)
    sumsq_y = jnp.sum(psumsq[:, :, 0], axis=0)       # (C_out,)
    mean = sum_y / R
    var = jnp.maximum(sumsq_y / R - mean * mean, 0.0)  # biased var (train-mode BN)
    scale = bn_gamma * jax.lax.rsqrt(var + BN_EPS)
    shift = (bn_beta - mean * scale).reshape(C_out, 1)
    w_scaled = w * scale[:, None]
    # conv_b is mathematically cancelled by the train-mode BN mean subtraction.
    # (If this path is ever reused for eval-mode BN with running stats, the bias
    #  must be reintroduced.)

    # ---- pass 1: conv + shift + ReLU + residual, fully parallel over (batch, length) ----
    vec_spec = pl.BlockSpec((C_out, 1), lambda n, l: (0, 0))
    out = pl.pallas_call(
        functools.partial(_norm_kernel, shortcut=optional_shortcut),
        out_shape=jax.ShapeDtypeStruct((N, C_out, L_pad), x.dtype),
        grid=grid,
        in_specs=[x_spec, w_spec, vec_spec],
        out_specs=pl.BlockSpec((1, C_out, TL), lambda n, l: (n, 0, l)),
        compiler_params=pltpu.CompilerParams(
            dimension_semantics=("parallel", "parallel"),
            vmem_limit_bytes=vmem_limit),
    )(x_p, w_scaled, shift)

    return out[:, :, :L] if L_pad != L else out


def _reference(x, conv_w, conv_b, bn_gamma, bn_beta):
    # Pure-JAX reference of the PyTorch forward (training-mode BN, biased variance).
    y = jnp.einsum("ncl,oc->nol", x, conv_w[:, :, 0]) + conv_b[None, :, None]
    mean = jnp.mean(y, axis=(0, 2), keepdims=True)
    var = jnp.mean((y - mean) ** 2, axis=(0, 2), keepdims=True)
    y = (y - mean) / jnp.sqrt(var + BN_EPS)
    y = y * bn_gamma[None, :, None] + bn_beta[None, :, None]
    y = jnp.maximum(y, 0.0)
    return y + x


if __name__ == "__main__":
    key = jax.random.PRNGKey(0)
    k_x, k_w, k_b, k_g, k_be = jax.random.split(key, 5)

    N, C, L = 2, 16, 256  # in_channels == out_channels == 16; L multiple of 128
    x = jax.random.normal(k_x, (N, C, L), dtype=jnp.float32)
    conv_w = jax.random.normal(k_w, (C, C, 1), dtype=jnp.float32) * 0.1
    conv_b = jax.random.normal(k_b, (C,), dtype=jnp.float32) * 0.1
    bn_gamma = 1.0 + 0.05 * jax.random.normal(k_g, (C,), dtype=jnp.float32)
    bn_beta = 0.05 * jax.random.normal(k_be, (C,), dtype=jnp.float32)

    out = residual_block(x, conv_w, conv_b, bn_gamma, bn_beta)
    out = jax.block_until_ready(out)

    ref = _reference(x, conv_w, conv_b, bn_gamma, bn_beta)
    assert out.shape == (N, C, L)
    assert jnp.allclose(out, ref, atol=1e-4, rtol=1e-4), float(jnp.max(jnp.abs(out - ref)))

    print("KERNEL_OK")
</pallas_src>

<mosaic_0001>
module attributes {stable_mosaic.version = 11 : i64} {
  func.func @_stats_kernel(%arg0: i32, %arg1: i32, %arg2: memref<1x16x256xf32, #tpu.memory_space<vmem>>, %arg3: memref<16x16xf32, #tpu.memory_space<vmem>>, %arg4: memref<1x16x1xf32, #tpu.memory_space<vmem>>, %arg5: memref<1x16x1xf32, #tpu.memory_space<vmem>>) attributes {dimension_semantics = [#tpu.dimension_semantics<parallel>, #tpu.dimension_semantics<arbitrary>], iteration_bounds = array<i64: 2, 1>, scalar_prefetch = 0 : i64, scratch_operands = 0 : i64, tpu.core_type = #tpu.core_type<tc>, window_params = [{transform_indices = @transform_0, window_bounds = array<i64: 1, 16, 256>}, {pipeline_mode = #tpu.pipeline_mode<synchronous>, transform_indices = @transform_1, window_bounds = array<i64: 16, 16>}, {transform_indices = @transform_2, window_bounds = array<i64: 1, 16, 1>}, {transform_indices = @transform_3, window_bounds = array<i64: 1, 16, 1>}]} {
    %c0_i32 = arith.constant 0 : i32
    %0 = arith.cmpi eq, %arg1, %c0_i32 : i32
    %1 = arith.extui %0 : i1 to i32
    %c0_i32_0 = arith.constant 0 : i32
    %2 = arith.cmpi ne, %1, %c0_i32_0 : i32
    scf.if %2 {
      %cst_19 = arith.constant 0.000000e+00 : f32
      %24 = vector.broadcast %cst_19 : f32 to vector<1x16x1xf32>
      %c0_20 = arith.constant 0 : index
      %c0_21 = arith.constant 0 : index
      %c0_22 = arith.constant 0 : index
      %25 = vector.load %arg4[%c0_20, %c0_21, %c0_22] : memref<1x16x1xf32, #tpu.memory_space<vmem>>, vector<1x16x1xf32>
      tpu.vector_store %arg4[%c0_20, %c0_21, %c0_22], %24 {strides = array<i32>} : memref<1x16x1xf32, #tpu.memory_space<vmem>>, vector<1x16x1xf32>,
      %cst_23 = arith.constant 0.000000e+00 : f32
      %26 = vector.broadcast %cst_23 : f32 to vector<1x16x1xf32>
      %c0_24 = arith.constant 0 : index
      %c0_25 = arith.constant 0 : index
      %c0_26 = arith.constant 0 : index
      %27 = vector.load %arg5[%c0_24, %c0_25, %c0_26] : memref<1x16x1xf32, #tpu.memory_space<vmem>>, vector<1x16x1xf32>
      tpu.vector_store %arg5[%c0_24, %c0_25, %c0_26], %26 {strides = array<i32>} : memref<1x16x1xf32, #tpu.memory_space<vmem>>, vector<1x16x1xf32>,
    } else {
    }
    %c0 = arith.constant 0 : index
    %c0_1 = arith.constant 0 : index
    %c0_2 = arith.constant 0 : index
    %3 = vector.load %arg2[%c0, %c0_1, %c0_2] : memref<1x16x256xf32, #tpu.memory_space<vmem>>, vector<1x16x256xf32>
    %4 = vector.shape_cast %3 : vector<1x16x256xf32> to vector<16x256xf32>
    %c0_3 = arith.constant 0 : index
    %c0_4 = arith.constant 0 : index
    %5 = vector.load %arg3[%c0_3, %c0_4] : memref<16x16xf32, #tpu.memory_space<vmem>>, vector<16x16xf32>
    %cst = arith.constant dense<0.000000e+00> : vector<16x256xf32>
    %6 = tpu.matmul %5, %4, %cst {dimension_numbers = #tpu.dot_dimension_numbers<[1], [0], [0], [1], [0, 0, 1, 1], [], []>} : vector<16x16xf32>, vector<16x256xf32>, vector<16x256xf32> -> vector<16x256xf32>
    %c0_5 = arith.constant 0 : index
    %c0_6 = arith.constant 0 : index
    %c0_7 = arith.constant 0 : index
    %7 = vector.load %arg4[%c0_5, %c0_6, %c0_7] : memref<1x16x1xf32, #tpu.memory_space<vmem>>, vector<1x16x1xf32>
    %8 = vector.shape_cast %7 : vector<1x16x1xf32> to vector<16x1xf32>
    %cst_8 = arith.constant dense<0.000000e+00> : vector<16xf32>
    %9 = vector.multi_reduction <add>, %6, %cst_8 [1] : vector<16x256xf32> to vector<16xf32>
    %10 = vector.shape_cast %9 : vector<16xf32> to vector<16x1xf32>
    %11 = arith.addf %8, %10 : vector<16x1xf32>
    %c0_9 = arith.constant 0 : index
    %c0_10 = arith.constant 0 : index
    %c0_11 = arith.constant 0 : index
    %12 = vector.load %arg4[%c0_9, %c0_10, %c0_11] : memref<1x16x1xf32, #tpu.memory_space<vmem>>, vector<1x16x1xf32>
    %13 = vector.shape_cast %12 : vector<1x16x1xf32> to vector<16x1xf32>
    %14 = vector.shape_cast %11 : vector<16x1xf32> to vector<1x16x1xf32>
    tpu.vector_store %arg4[%c0_9, %c0_10, %c0_11], %14 {strides = array<i32>} : memref<1x16x1xf32, #tpu.memory_space<vmem>>, vector<1x16x1xf32>,
    %c0_12 = arith.constant 0 : index
    %c0_13 = arith.constant 0 : index
    %c0_14 = arith.constant 0 : index
    %15 = vector.load %arg5[%c0_12, %c0_13, %c0_14] : memref<1x16x1xf32, #tpu.memory_space<vmem>>, vector<1x16x1xf32>
    %16 = vector.shape_cast %15 : vector<1x16x1xf32> to vector<16x1xf32>
    %17 = arith.mulf %6, %6 : vector<16x256xf32>
    %cst_15 = arith.constant dense<0.000000e+00> : vector<16xf32>
    %18 = vector.multi_reduction <add>, %17, %cst_15 [1] : vector<16x256xf32> to vector<16xf32>
    %19 = vector.shape_cast %18 : vector<16xf32> to vector<16x1xf32>
    %20 = arith.addf %16, %19 : vector<16x1xf32>
    %c0_16 = arith.constant 0 : index
    %c0_17 = arith.constant 0 : index
    %c0_18 = arith.constant 0 : index
    %21 = vector.load %arg5[%c0_16, %c0_17, %c0_18] : memref<1x16x1xf32, #tpu.memory_space<vmem>>, vector<1x16x1xf32>
    %22 = vector.shape_cast %21 : vector<1x16x1xf32> to vector<16x1xf32>
    %23 = vector.shape_cast %20 : vector<16x1xf32> to vector<1x16x1xf32>
    tpu.vector_store %arg5[%c0_16, %c0_17, %c0_18], %23 {strides = array<i32>} : memref<1x16x1xf32, #tpu.memory_space<vmem>>, vector<1x16x1xf32>,
    return
  }
  func.func @transform_0(%arg0: i32, %arg1: i32) -> (i32, i32, i32) {
    %c0_i32 = arith.constant 0 : i32
    %c0_i32_0 = arith.constant 0 : i32
    return %arg0, %c0_i32, %arg1 : i32, i32, i32
  }
  func.func @transform_1(%arg0: i32, %arg1: i32) -> (i32, i32) {
    %c0_i32 = arith.constant 0 : i32
    %c0_i32_0 = arith.constant 0 : i32
    %c0_i32_1 = arith.constant 0 : i32
    return %c0_i32, %c0_i32_0 : i32, i32
  }
  func.func @transform_2(%arg0: i32, %arg1: i32) -> (i32, i32, i32) {
    %c0_i32 = arith.constant 0 : i32
    %c0_i32_0 = arith.constant 0 : i32
    %c0_i32_1 = arith.constant 0 : i32
    return %arg0, %c0_i32, %c0_i32_0 : i32, i32, i32
  }
  func.func @transform_3(%arg0: i32, %arg1: i32) -> (i32, i32, i32) {
    %c0_i32 = arith.constant 0 : i32
    %c0_i32_0 = arith.constant 0 : i32
    %c0_i32_1 = arith.constant 0 : i32
    return %arg0, %c0_i32, %c0_i32_0 : i32, i32, i32
  }
}

</mosaic_0001>

<llo_original>
// kernel: tpu_custom_call.1
$region0: #{tpu_custom_call.1}
  #allocation0 [shape = 'u32[]', space=smem, size = 0x4, offset = 0x4, fixed_abs, tag = 'smem constant byte address 0x4 - core index']
  #allocation1 [shape = 'u32[144,128]{1,0:T(1,128)}', space=vmem, size = 0x12000, scoped, tag = 'internal scratch']
  %s0 = inlined_call_operand.hbm [shape: f32[2,16,256], index: 0, kind: input, shape index: {}]
  %s1 = inlined_call_operand.hbm [shape: f32[16,16], index: 1, kind: input, shape index: {}]
  %s2 = inlined_call_operand.vmem [shape: f32[2,16,1], index: 2, kind: output, shape index: {0}]
  %s3 = inlined_call_operand.vmem [shape: f32[2,16,1], index: 3, kind: output, shape index: {1}]
  %4 = xla_tuple %s2, %s3
  %s5 = sld [smem:[#allocation0]]
  $region61: #{tpu_custom_call.1} parent=0
    _
  %s7 = ssub.s32 1, %s5
  %s8 = scalar_select 0, %s7, %s5
  $region1: #{tpu_custom_call.1} parent=0
    #allocation2 [shape = 'u8[32768]{0}', space=vmem, size = 0x8000, scoped, tag = 'input window, operand 0']
    #allocation3 [shape = 's32[2]{0}', space=sflag, size = 0x8, scoped, tag = 'scoped memory for tpu_custom_call.1']
    #allocation4 [shape = 'u8[8192]{0}', space=vmem, size = 0x2000, scoped, tag = 'input window, operand 1, single buffered']
    #allocation5 [shape = 's32[1]{0}', space=sflag, size = 0x4, scoped, tag = 'scoped memory for tpu_custom_call.1']
    %9 = vsyncpa [#allocation3], 0
    %s10 = scalar_lea.sflag [#allocation3], 1
    %11 = vsyncpa %s10, 0
    %12 = vsyncpa [#allocation5], 0
    loop: start=0, step=1, limit=4
    $region2: #{tpu_custom_call.1} parent=1 // loop_pre_header
      _
    $region3: #{tpu_custom_call.1} parent=1 // loop_header
      %s14 = sphi 0, %s18
      %p15 = scmp.ge.s32.totalorder %s14, 4
      %s21 = sphi 0, %s33
      %s22 = sphi 0, %s29
      %s23 = sphi 0, %s21
      %s24 = sphi 0, %s22
      %s25 = sphi 0, %s23
      %s26 = sphi 0, %s24
      %s38 = sphi 0, %s40
      %s41 = sphi 0, %s38
      %s42 = sphi 0, %s41
      %s58 = sphi 0, %s42
      %s62 = sphi 0, %s62
      %s64 = sphi 0, %s62
      %s65 = sphi 0, %s64
      %s79 = sphi 0, %s65
      %s85 = sphi 0, %s87
      %s88 = sphi 0, %s85
      %s89 = sphi 0, %s88
      %s105 = sphi 0, %s89
      %s111 = sphi 0, %s113
      %s114 = sphi 0, %s111
      %s115 = sphi 0, %s114
      %s131 = sphi 0, %s115
    $region4: #{tpu_custom_call.1} parent=1 // loop_header_branch
      %17 = sbr.rel (%p15) target = $region8
    $region5: #{tpu_custom_call.1} parent=1 // loop_body
      %s19 = ssub.s32 %s14, 1
      %s20 = ssub.s32 %s14, 2
      %s27 = sadd.s32 1, %s22
      %p28 = scmp.ge.s32.totalorder %s27, 1
      %s29 = scalar_select %p28, 0, %s27
      %s30 = sadd.s32 1, %s21
      %s31 = scalar_select %p28, %s30, %s21
      %p32 = scmp.ge.s32.totalorder %s31, 2
      %s33 = scalar_select %p32, 0, %s31
      %s34 = ssub.s32 %s21, %s33
      %s35 = ssub.s32 %s22, %s29
      %s36 = sor.u32 %s34, %s35
      %p37 = scmp.eq.s32.totalorder %s36, 0
      %s39 = sadd.s32 %s38, 1
      %s40 = scalar_select %p37, %s38, %s39
      %p43 = pneg %p37
      %p44 = scmp.eq.s32.totalorder %s14, 1
      %p45 = por %p43, %p44
      %p46 = scmp.ne.s32.totalorder %s38, %s41
      %p47 = scmp.eq.s32.totalorder %s14, 0
      %p48 = por %p46, %p47
      %p49 = scmp.ne.s32.totalorder %s38, %s41
      %p50 = scmp.eq.s32.totalorder %s19, 1
      %p51 = por %p49, %p50
      %p52 = scmp.ne.s32.totalorder %s41, %s42
      %p53 = scmp.eq.s32.totalorder %s19, 0
      %p54 = por %p52, %p53
      %p55 = scmp.ne.s32.totalorder %s41, %s42
      %p56 = scmp.eq.s32.totalorder %s20, 1
      %p57 = por %p55, %p56
      %p59 = scmp.ne.s32.totalorder %s42, %s58
      %p60 = scmp.eq.s32.totalorder %s20, 0
      %p61 = por %p59, %p60
      %s63 = sadd.s32 %s62, 1
      %p66 = scmp.eq.s32.totalorder %s14, 1
      %p67 = scmp.ne.s32.totalorder %s62, %s64
      %p68 = scmp.eq.s32.totalorder %s14, 0
      %p69 = por %p67, %p68
      %p70 = scmp.ne.s32.totalorder %s62, %s64
      %p71 = scmp.eq.s32.totalorder %s19, 1
      %p72 = por %p70, %p71
      %p73 = scmp.ne.s32.totalorder %s64, %s65
      %p74 = scmp.eq.s32.totalorder %s19, 0
      %p75 = por %p73, %p74
      %p76 = scmp.ne.s32.totalorder %s64, %s65
      %p77 = scmp.eq.s32.totalorder %s20, 1
      %p78 = por %p76, %p77
      %p80 = scmp.ne.s32.totalorder %s65, %s79
      %p81 = scmp.eq.s32.totalorder %s20, 0
      %p82 = por %p80, %p81
      %s83 = ssub.s32 %s21, %s33
      %p84 = scmp.eq.s32.totalorder %s83, 0
      %s86 = sadd.s32 %s85, 1
      %s87 = scalar_select %p84, %s85, %s86
      %p90 = pneg %p84
      %p91 = scmp.eq.s32.totalorder %s14, 1
      %p92 = por %p90, %p91
      %p93 = scmp.ne.s32.totalorder %s85, %s88
      %p94 = scmp.eq.s32.totalorder %s14, 0
      %p95 = por %p93, %p94
      %p96 = scmp.ne.s32.totalorder %s85, %s88
      %p97 = scmp.eq.s32.totalorder %s19, 1
      %p98 = por %p96, %p97
      %p99 = scmp.ne.s32.totalorder %s88, %s89
      %p100 = scmp.eq.s32.totalorder %s19, 0
      %p101 = por %p99, %p100
      %p102 = scmp.ne.s32.totalorder %s88, %s89
      %p103 = scmp.eq.s32.totalorder %s20, 1
      %p104 = por %p102, %p103
      %p106 = scmp.ne.s32.totalorder %s89, %s105
      %p107 = scmp.eq.s32.totalorder %s20, 0
      %p108 = por %p106, %p107
      %s109 = ssub.s32 %s21, %s33
      %p110 = scmp.eq.s32.totalorder %s109, 0
      %s112 = sadd.s32 %s111, 1
      %s113 = scalar_select %p110, %s111, %s112
      %p116 = pneg %p110
      %p117 = scmp.eq.s32.totalorder %s14, 1
      %p118 = por %p116, %p117
      %p119 = scmp.ne.s32.totalorder %s111, %s114
      %p120 = scmp.eq.s32.totalorder %s14, 0
      %p121 = por %p119, %p120
      %p122 = scmp.ne.s32.totalorder %s111, %s114
      %p123 = scmp.eq.s32.totalorder %s19, 1
      %p124 = por %p122, %p123
      %p125 = scmp.ne.s32.totalorder %s114, %s115
      %p126 = scmp.eq.s32.totalorder %s19, 0
      %p127 = por %p125, %p126
      %p128 = scmp.ne.s32.totalorder %s114, %s115
      %p129 = scmp.eq.s32.totalorder %s20, 1
      %p130 = por %p128, %p129
      %p132 = scmp.ne.s32.totalorder %s115, %s131
      %p133 = scmp.eq.s32.totalorder %s20, 0
      %p134 = por %p132, %p133
      %p135 = scmp.le.s32.totalorder 1, %s14
      %p136 = scmp.lt.s32.totalorder %s14, 3
      %p137 = pnand %p135, %p136
      %p138 = pneg %p137
      // Predicated region
      $region9: #{tpu_custom_call.1} parent=5 // pred_check
        _
      $region10: #{tpu_custom_call.1} parent=5 // pred_check_branch
        %140 = sbr.rel (%p137) target = $region12
      $region11: #{tpu_custom_call.1} parent=5 // pred_region
        %s141 = ssub.s32 %s14, 1
        // Predicated region
        $region13: #{tpu_custom_call.1} parent=11 // pred_check
          %p142 = pneg %p75
        $region14: #{tpu_custom_call.1} parent=11 // pred_check_branch
          %144 = sbr.rel (%p142) target = $region16
        $region15: #{tpu_custom_call.1} parent=11 // pred_region
          %s146 = ssub.s32 256, 256
          %147 = vsyncadd [#allocation5], %s146
          %s148 = sshll.u32 [#allocation4], 4
          %s149 = int_to_ptr.vmem [resolvable:$true] %s148
          %154 = dma.hbm_to_vmem [thread:$0]  %s1, 256, %s149, [#allocation5], 128, 128, 8
        $region16: #{tpu_custom_call.1} parent=11 // pred_fallthru
          _
      $region12: #{tpu_custom_call.1} parent=5 // pred_fallthru
        _
      %p155 = scmp.lt.s32.totalorder %s14, 2
      // Predicated region
      $region17: #{tpu_custom_call.1} parent=5 // pred_check
        %p156 = pneg %p155
      $region18: #{tpu_custom_call.1} parent=5 // pred_check_branch
        %158 = sbr.rel (%p156) target = $region20
      $region19: #{tpu_custom_call.1} parent=5 // pred_region
        // Predicated region
        $region21: #{tpu_custom_call.1} parent=19 // pred_check
          %p159 = pneg %p48
        $region22: #{tpu_custom_call.1} parent=19 // pred_check_branch
          %161 = sbr.rel (%p159) target = $region24
        $region23: #{tpu_custom_call.1} parent=19 // pred_region
          %s162 = sand.u32 %s38, 1
          %s163 = scalar_lea.sflag [#allocation3], %s162
          %s164 = sand.u32 %s38, 1
          %s165 = smul.addr %s164, 32
          %s166 = scalar_lea.vmem [#allocation2], %s165
          %s167 = smul.u32 2, %s22
          %s169 = ssub.s32 512, 512
          %170 = vsyncadd %s163, %s169
          %s171 = smul.addr %s21, 4
          %s172 = sadd.s32 %s167, %s171
          %s173 = smul.addr %s172, 128
          %s174 = scalar_lea.hbm %s0, %s173
          %s175 = sshll.u32 %s166, 4
          %s176 = int_to_ptr.vmem [resolvable:$true] %s175
          %181 = dma.hbm_to_vmem [thread:$0]  %s174, 512, %s176, %s163, 256, 256, 16
        $region24: #{tpu_custom_call.1} parent=19 // pred_fallthru
          _
      $region20: #{tpu_custom_call.1} parent=5 // pred_fallthru
        _
      %p182 = scmp.le.s32.totalorder 1, %s14
      %p183 = scmp.lt.s32.totalorder %s14, 3
      %p184 = pnand %p182, %p183
      %p185 = pneg %p184
      // Predicated region
      $region25: #{tpu_custom_call.1} parent=5 // pred_check
        _
      $region26: #{tpu_custom_call.1} parent=5 // pred_check_branch
        %187 = sbr.rel (%p184) target = $region28
      $region27: #{tpu_custom_call.1} parent=5 // pred_region
        %s188 = ssub.s32 %s14, 1
        %s189 = sand.u32 %s41, 1
        %s190 = scalar_lea.sflag [#allocation3], %s189
        %s191 = sand.u32 %s41, 1
        %s192 = smul.addr %s191, 32
        %s193 = scalar_lea.vmem [#allocation2], %s192
        // Predicated region
        $region29: #{tpu_custom_call.1} parent=27 // pred_check
          %p194 = pneg %p54
        $region30: #{tpu_custom_call.1} parent=27 // pred_check_branch
          %196 = sbr.rel (%p194) target = $region32
        $region31: #{tpu_custom_call.1} parent=27 // pred_region
          %197 = dma.done %s190, 512
        $region32: #{tpu_custom_call.1} parent=27 // pred_fallthru
          _
        // Predicated region
        $region33: #{tpu_custom_call.1} parent=27 // pred_check
          %p198 = pneg %p75
        $region34: #{tpu_custom_call.1} parent=27 // pred_check_branch
          %200 = sbr.rel (%p198) target = $region36
        $region35: #{tpu_custom_call.1} parent=27 // pred_region
          %201 = dma.done [#allocation5], 256
        $region36: #{tpu_custom_call.1} parent=27 // pred_fallthru
          _
        %s202 = sand.u32 %s41, 1
        %s203 = scalar_lea.sflag [#allocation3], %s202
        %s204 = sand.u32 %s41, 1
        %s205 = smul.addr %s204, 32
        %s206 = scalar_lea.vmem [#allocation2], %s205
        %p207 = pneg %p54
        %p208 = pneg %p51
        %p209 = pneg %p75
        %p210 = pneg %p72
        %p211 = pneg %p101
        %p212 = pneg %p98
        %p213 = scmp.lt.s32.totalorder %s23, 1
        %s214 = scalar_select %p213, %s23, 1
        %s215 = smul.addr %s214, 2
        %s216 = smul.addr %s215, 8
        %s217 = scalar_lea.vmem %s2, %s216
        %p218 = pneg %p127
        %p219 = pneg %p124
        %p220 = scmp.lt.s32.totalorder %s23, 1
        %s221 = scalar_select %p220, %s23, 1
        %s222 = smul.addr %s221, 2
        %s223 = smul.addr %s222, 8
        %s224 = scalar_lea.vmem %s3, %s223
        %s225 = smul.u32 2, %s24
        %p226 = scmp.lt.s32.totalorder %s23, 1
        %s227 = scalar_select %p226, %s23, 1
        %s228 = smul.addr %s227, 2
        %s229 = smul.addr %s228, 8
        %s230 = scalar_lea.vmem %s2, %s229
        %p231 = scmp.lt.s32.totalorder %s23, 1
        %s232 = scalar_select %p231, %s23, 1
        %s233 = smul.addr %s232, 2
        %s234 = smul.addr %s233, 8
        %s235 = scalar_lea.vmem %s3, %s234
        %p236 = scmp.eq.s32.totalorder %s24, 0
        // Predicated region
        $region37: #{tpu_custom_call.1} parent=27 // pred_check
          %p237 = pneg %p236
        $region38: #{tpu_custom_call.1} parent=27 // pred_check_branch
          %239 = sbr.rel (%p237) target = $region40
        $region39: #{tpu_custom_call.1} parent=27 // pred_region
          %vm240 = vcmask 7168
          %241 = vst.msk [vmem:[%s230] sm:$0xff] %vm240, 0.0
          %242 = vst.msk [vmem:[%s230 + $0x8] sm:$0xff] %vm240, 0.0
          %243 = vst.msk [vmem:[%s235] sm:$0xff] %vm240, 0.0
          %244 = vst.msk [vmem:[%s235 + $0x8] sm:$0xff] %vm240, 0.0
        $region40: #{tpu_custom_call.1} parent=27 // pred_fallthru
          _
        %v245 = vld [vmem:[%s193] sm:$0xff]
        %v246 = vld [vmem:[%s193 + $0x8] sm:$0xff]
        %v247 = vld [vmem:[%s193 + $0x10] sm:$0xff]
        %v248 = vld [vmem:[%s193 + $0x18] sm:$0xff]
        %v249 = vld [vmem:[#allocation4] sm:$0xff]
        %v250 = vld [vmem:[#allocation4 + $0x8] sm:$0xff]
        %vm251 = vcmask 130048
        %v253 = vsel %vm251, %v249, 0
        %v256 = vsel %vm251, %v250, 0
        %258 = vmatprep.subr.mxu0 %v246
        %259 = vmatpush1.msra.mxu0 %v245
        %260 = vmatprep.subr.mxu0 %v248
        %261 = vmatpush1.msra.mxu0 %v247
        %262 = vmatprep.subr.mxu0 0.0
        %263 = vmatpush1.msra.mxu0 0.0
        %264 = vmatprep.subr.mxu0 0.0
        %265 = vmatpush1.msra.mxu0 0.0
        %266 = vmatprep.subr.mxu0 0.0
        %267 = vmatpush1.msra.mxu0 0.0
        %268 = vmatprep.subr.mxu0 0.0
        %269 = vmatpush1.msra.mxu0 0.0
        %270 = vmatprep.subr.mxu0 0.0
        %271 = vmatpush1.msra.mxu0 0.0
        %272 = vmatprep.subr.mxu0 0.0
        %273 = vmatpush1.msra.mxu0 0.0
        %274 = vmatprep.subr.mxu0 0.0
        %275 = vmatpush1.msra.mxu0 0.0
        %276 = vmatprep.subr.mxu0 0.0
        %277 = vmatpush1.msra.mxu0 0.0
        %278 = vmatprep.subr.mxu0 0.0
        %279 = vmatpush1.msra.mxu0 0.0
        %280 = vmatprep.subr.mxu0 0.0
        %281 = vmatpush1.msra.mxu0 0.0
        %282 = vmatprep.subr.mxu0 0.0
        %283 = vmatpush1.msra.mxu0 0.0
        %284 = vmatprep.subr.mxu0 0.0
        %285 = vmatpush1.msra.mxu0 0.0
        %286 = vmatprep.subr.mxu0 0.0
        %287 = vmatpush1.msra.mxu0 0.0
        %288 = vmatprep.subr.mxu0 0.0
        %289 = vmatpush1.msra.mxu0 0.0
        %290 = vmatprep.subr.mxu0 0.0
        %291 = vmatpush1.msra.mxu0 0.0
        %292 = vmatprep.subr.mxu0 0.0
        %293 = vmatpush1.msra.mxu0 0.0
        %294 = vmatprep.subr.mxu0 0.0
        %295 = vmatpush1.msra.mxu0 0.0
        %296 = vmatprep.subr.mxu0 0.0
        %297 = vmatpush1.msra.mxu0 0.0
        %298 = vmatprep.subr.mxu0 0.0
        %299 = vmatpush1.msra.mxu0 0.0
        %300 = vmatprep.subr.mxu0 0.0
        %301 = vmatpush1.msra.mxu0 0.0
        %302 = vmatprep.subr.mxu0 0.0
        %303 = vmatpush1.msra.mxu0 0.0
        %304 = vmatprep.subr.mxu0 0.0
        %305 = vmatpush1.msra.mxu0 0.0
        %306 = vmatprep.subr.mxu0 0.0
        %307 = vmatpush1.msra.mxu0 0.0
        %308 = vmatprep.subr.mxu0 0.0
        %309 = vmatpush1.msra.mxu0 0.0
        %310 = vmatprep.subr.mxu0 0.0
        %311 = vmatpush1.msra.mxu0 0.0
        %312 = vmatprep.subr.mxu0 0.0
        %313 = vmatpush1.msra.mxu0 0.0
        %314 = vmatprep.subr.mxu0 0.0
        %315 = vmatpush1.msra.mxu0 0.0
        %316 = vmatprep.subr.mxu0 0.0
        %317 = vmatpush1.msra.mxu0 0.0
        %318 = vmatprep.subr.mxu0 0.0
        %319 = vmatpush1.msra.mxu0 0.0
        %320 = vmatprep.subr.mxu0 0.0
        %321 = vmatpush1.msra.mxu0 0.0
        %322 = vmatprep.mubr.f32.mxu0 0.0
        %323 = vmatmul.mubr.f32.gmra.mrb[0].mxu0 %v253
        %v324 = vpop.f32.mrb[0].mxu0
        %v325 = vadd.f32 0.0, %v324
        %v326 = vpop.f32.mrb[0].mxu0
        %v327 = vadd.f32 0.0, %v326
        %328 = vmatprep.mubr.f32.mxu0 0.0
        %329 = vmatmul.mubr.f32.gmra.mrb[0].mxu0 %v256
        %v330 = vpop.f32.mrb[0].mxu0
        %v331 = vadd.f32 0.0, %v330
        %v332 = vpop.f32.mrb[0].mxu0
        %v333 = vadd.f32 0.0, %v332
        %334 = vdwg.mxu0
        %v335 = vld [vmem:[%s230] sm:$0xff]
        %v336 = vld [vmem:[%s230 + $0x8] sm:$0xff]
        %v337 = vadd.f32 %v325, %v327
        %338 = vadd.xlane.f32.xlu0 %v337
        %v339 = vpop.xlane.xlu0 %338
        %v340 = vadd.f32 %v331, %v333
        %341 = vadd.xlane.f32.xlu0 %v340
        %v342 = vpop.xlane.xlu0 %341
        %v343 = vadd.f32 %v335, %v339
        %v344 = vadd.f32 %v336, %v342
        %vm345 = vcmask 7168
        %346 = vst.msk [vmem:[%s230] sm:$0xff] %vm345, %v343
        %347 = vst.msk [vmem:[%s230 + $0x8] sm:$0xff] %vm345, %v344
        %v348 = vld [vmem:[%s235] sm:$0xff]
        %v349 = vld [vmem:[%s235 + $0x8] sm:$0xff]
        %v350 = vmul.f32 %v325, %v325
        %v351 = vmul.f32 %v327, %v327
        %v352 = vmul.f32 %v331, %v331
        %v353 = vmul.f32 %v333, %v333
        %v354 = vadd.f32 %v350, %v351
        %355 = vadd.xlane.f32.xlu0 %v354
        %v356 = vpop.xlane.xlu0 %355
        %v357 = vadd.f32 %v352, %v353
        %358 = vadd.xlane.f32.xlu0 %v357
        %v359 = vpop.xlane.xlu0 %358
        %v360 = vadd.f32 %v348, %v356
        %v361 = vadd.f32 %v349, %v359
        %362 = vst.msk [vmem:[%s235] sm:$0xff] %vm345, %v360
        %363 = vst.msk [vmem:[%s235 + $0x8] sm:$0xff] %vm345, %v361
        %p364 = scmp.lt.s32.totalorder %s23, 1
        %s365 = scalar_select %p364, %s23, 1
        %s366 = smul.addr %s365, 2
        %s367 = smul.addr %s366, 8
        %s368 = scalar_lea.vmem %s2, %s367
        %p369 = scmp.lt.s32.totalorder %s23, 1
        %s370 = scalar_select %p369, %s23, 1
        %s371 = smul.addr %s370, 2
        %s372 = smul.addr %s371, 8
        %s373 = scalar_lea.vmem %s3, %s372
        // Predicated region
        $region41: #{tpu_custom_call.1} parent=27 // pred_check
          %p374 = pneg %p98
        $region42: #{tpu_custom_call.1} parent=27 // pred_check_branch
          %376 = sbr.rel (%p374) target = $region44
        $region43: #{tpu_custom_call.1} parent=27 // pred_region
          _
        $region44: #{tpu_custom_call.1} parent=27 // pred_fallthru
          _
        // Predicated region
        $region45: #{tpu_custom_call.1} parent=27 // pred_check
          %p377 = pneg %p124
        $region46: #{tpu_custom_call.1} parent=27 // pred_check_branch
          %379 = sbr.rel (%p377) target = $region48
        $region47: #{tpu_custom_call.1} parent=27 // pred_region
          _
        $region48: #{tpu_custom_call.1} parent=27 // pred_fallthru
          _
      $region28: #{tpu_custom_call.1} parent=5 // pred_fallthru
        _
      %p380 = scmp.le.s32.totalorder 2, %s14
      // Predicated region
      $region49: #{tpu_custom_call.1} parent=5 // pred_check
        %p381 = pneg %p380
      $region50: #{tpu_custom_call.1} parent=5 // pred_check_branch
        %383 = sbr.rel (%p381) target = $region52
      $region51: #{tpu_custom_call.1} parent=5 // pred_region
        %s384 = ssub.s32 %s14, 2
        // Predicated region
        $region53: #{tpu_custom_call.1} parent=51 // pred_check
          %p385 = pneg %p104
        $region54: #{tpu_custom_call.1} parent=51 // pred_check_branch
          %387 = sbr.rel (%p385) target = $region56
        $region55: #{tpu_custom_call.1} parent=51 // pred_region
          %p388 = scmp.lt.s32.totalorder %s25, 1
          %s389 = scalar_select %p388, %s25, 1
          %s390 = smul.addr %s389, 2
          %s391 = smul.addr %s390, 8
          %s392 = scalar_lea.vmem %s2, %s391
        $region56: #{tpu_custom_call.1} parent=51 // pred_fallthru
          _
        // Predicated region
        $region57: #{tpu_custom_call.1} parent=51 // pred_check
          %p393 = pneg %p130
        $region58: #{tpu_custom_call.1} parent=51 // pred_check_branch
          %395 = sbr.rel (%p393) target = $region60
        $region59: #{tpu_custom_call.1} parent=51 // pred_region
          %p396 = scmp.lt.s32.totalorder %s25, 1
          %s397 = scalar_select %p396, %s25, 1
          %s398 = smul.addr %s397, 2
          %s399 = smul.addr %s398, 8
          %s400 = scalar_lea.vmem %s3, %s399
        $region60: #{tpu_custom_call.1} parent=51 // pred_fallthru
          _
      $region52: #{tpu_custom_call.1} parent=5 // pred_fallthru
        _
    $region6: #{tpu_custom_call.1} parent=1 // loop_footer
      %s18 = sadd.s32 1, %s14
    $region7: #{tpu_custom_call.1} parent=1 // loop_footer_branch
      %13 = sbr.rel target = $region3
    $region8: #{tpu_custom_call.1} parent=1 // loop_exit
      _
    %401 = vsyncpa [#allocation3], 1
    %s402 = scalar_lea.sflag [#allocation3], 1
    %403 = vsyncpa %s402, 1
    %404 = vsyncpa [#allocation5], 1

</llo_original>
